<compile_context>
chip_gen: v7x
topology: tpu7x:2x2x1
jax: 0.10.0
libtpu: 0.0.40
codegen_flags: <defaults>
</compile_context>

<pallas_src>
import jax
import jax.numpy as jnp
from jax import lax
from jax.experimental import pallas as pl
from jax.experimental.pallas import tpu as pltpu


_TARGET_STEP_BYTES = 8 * 1024 * 1024    # ~8 MiB of x+y DMA per grid step
_MAX_STEP_BYTES = 12 * 1024 * 1024      # double-buffered footprint <= ~24 MiB


def _make_channel_linear_kernel(bblk):
    """Builds the kernel for a (bblk, C_in, tn) -> (bblk, C_out, tn) tile."""

    def kernel(x_ref, w_ref, b_ref, o_ref):
        # x_ref: (bblk, C_in, tn)  w_ref: (C_out, C_in)  b_ref: (C_out, 1) f32
        # o_ref: (bblk, C_out, tn).  Lane dim = spatial tile -> dense stores.
        w = w_ref[...]
        bias = b_ref[...]
        if bblk == 1:
            acc = jnp.dot(w, x_ref[0], preferred_element_type=jnp.float32)
            o_ref[0] = (acc + bias).astype(o_ref.dtype)
        else:
            def body(i, carry):
                acc = jnp.dot(w, x_ref[i], preferred_element_type=jnp.float32)
                o_ref[i] = (acc + bias).astype(o_ref.dtype)
                return carry

            lax.fori_loop(0, bblk, body, 0, unroll=(bblk <= 8))

    return kernel


def channel_linear(x_nchw, w, b, *, spatial_tile=None, io_dtype=None,
                   out_dtype=None):
    """Forward pass of ChannelLinear, NCHW-native.

    x_nchw: (B, C_in, H, W)
    w:      (C_out, C_in)   -- PyTorch nn.Linear weight layout
    b:      (C_out,)
    spatial_tile: optional override for the spatial (lane) tile size.
    io_dtype:     optional cast for x / w (e.g. jnp.bfloat16 halves HBM traffic;
                  accumulation stays f32).
    out_dtype:    output dtype (defaults to the (possibly cast) input dtype).
    returns (B, C_out, H, W)
    """
    B, C_in, H, W = x_nchw.shape
    C_out, C_in_w = w.shape
    assert C_in_w == C_in, f"Input features {C_in} != {C_in_w}"
    S = H * W

    if io_dtype is not None:
        x_nchw = x_nchw.astype(io_dtype)
        w = w.astype(io_dtype)
    if out_dtype is None:
        out_dtype = x_nchw.dtype

    # (B, C_in, H, W) -> (B, C_in, S): contiguous reshape, no transpose, no pad.
    x3d = x_nchw.reshape(B, C_in, S)
    b2d = b.astype(jnp.float32).reshape(C_out, 1)

    in_isz = jnp.dtype(x3d.dtype).itemsize
    out_isz = jnp.dtype(out_dtype).itemsize
    bytes_per_lane = C_in * in_isz + C_out * out_isz   # x in + y out, per pixel

    target_lanes = max(128, _TARGET_STEP_BYTES // bytes_per_lane)
    max_lanes = max(128, _MAX_STEP_BYTES // bytes_per_lane)

    # Spatial (lane) tile + batch block per grid step.
    tn_want = target_lanes if spatial_tile is None else int(spatial_tile)
    tn_want = min(tn_want, max_lanes)
    if tn_want >= S:
        # Whole image per step; if the image is small, block the batch axis
        # too so each step still moves a roofline-friendly amount of data.
        tn = S
        bblk = max(1, min(B, target_lanes // max(1, S)))
    else:
        # Large image: 128-aligned lane tile; ragged last tile is handled by
        # Pallas partial-block masking (no pad / slice in HBM).
        tn = max(128, (tn_want // 128) * 128)
        bblk = 1

    grid = (pl.cdiv(B, bblk), pl.cdiv(S, tn))

    # VMEM: double-buffered x/out tiles + resident (tiny) weight/bias.
    vmem_need = (2 * bblk * tn * bytes_per_lane
                 + 2 * (C_out * C_in * in_isz + C_out * 4))
    try:
        vmem_cap = int(getattr(pltpu.get_tpu_info(), "vmem_capacity_bytes",
                               64 * 1024 * 1024))
    except Exception:  # pragma: no cover - conservative fallback (v7x-sized)
        vmem_cap = 64 * 1024 * 1024
    vmem_limit = int(min(max(32 * 1024 * 1024, 2 * vmem_need),
                         max(vmem_cap // 2, vmem_need + (2 << 20))))

    cost = pl.CostEstimate(
        flops=2 * B * S * C_in * C_out,
        transcendentals=0,
        bytes_accessed=(B * S * C_in * in_isz + B * S * C_out * out_isz
                        + C_out * C_in * in_isz + C_out * 4),
    )

    y3d = pl.pallas_call(
        _make_channel_linear_kernel(bblk),
        out_shape=jax.ShapeDtypeStruct((B, C_out, S), out_dtype),
        grid_spec=pltpu.PrefetchScalarGridSpec(
            num_scalar_prefetch=0,
            grid=grid,
            in_specs=[
                pl.BlockSpec((bblk, C_in, tn), lambda bi, si: (bi, 0, si)),
                pl.BlockSpec((C_out, C_in), lambda bi, si: (0, 0)),
                pl.BlockSpec((C_out, 1), lambda bi, si: (0, 0)),
            ],
            out_specs=pl.BlockSpec((bblk, C_out, tn),
                                   lambda bi, si: (bi, 0, si)),
        ),
        compiler_params=pltpu.CompilerParams(
            dimension_semantics=("parallel", "parallel"),
            vmem_limit_bytes=vmem_limit,
        ),
        cost_estimate=cost,
    )(x3d, w, b2d)

    return y3d.reshape(B, C_out, H, W)


if __name__ == "__main__":
    # Small shapes consistent with the module's forward.
    B, C_in, H, W = 2, 4, 16, 16
    C_out = 8

    key = jax.random.PRNGKey(0)
    kx, kw, kb = jax.random.split(key, 3)

    x = jax.random.normal(kx, (B, C_in, H, W), dtype=jnp.float32)

    # Deterministic nn.Linear-style init: U(-1/sqrt(in), 1/sqrt(in)).
    bound = 1.0 / (C_in ** 0.5)
    # PyTorch stores weight as (out_features, in_features); same layout here.
    w = jax.random.uniform(kw, (C_out, C_in), minval=-bound, maxval=bound,
                           dtype=jnp.float32)
    b = jax.random.uniform(kb, (C_out,), minval=-bound, maxval=bound,
                           dtype=jnp.float32)

    ref = jnp.einsum("oc,bchw->bohw", w, x) + b[None, :, None, None]

    # 1) f32, auto tiling (whole image + batch block per grid step).
    y = jax.block_until_ready(channel_linear(x, w, b))
    assert y.shape == (B, C_out, H, W)
    assert jnp.allclose(y, ref, atol=1e-5, rtol=1e-5)

    # 2) f32, forced small spatial tile with a ragged last block
    #    (exercises the pad/slice-free partial-block path, H*W=324, tn=256).
    x2 = jax.random.normal(kx, (B, C_in, 18, 18), dtype=jnp.float32)
    ref2 = jnp.einsum("oc,bchw->bohw", w, x2) + b[None, :, None, None]
    y2 = jax.block_until_ready(channel_linear(x2, w, b, spatial_tile=256))
    assert y2.shape == (B, C_out, 18, 18)
    assert jnp.allclose(y2, ref2, atol=1e-5, rtol=1e-5)

    # 3) bf16 I/O path (half the HBM traffic; f32 MXU accumulation inside).
    yb = jax.block_until_ready(channel_linear(x, w, b, io_dtype=jnp.bfloat16))
    refb = (jnp.einsum("oc,bchw->bohw",
                       w.astype(jnp.bfloat16).astype(jnp.float32),
                       x.astype(jnp.bfloat16).astype(jnp.float32))
            + b[None, :, None, None])
    assert yb.dtype == jnp.bfloat16
    assert jnp.allclose(yb.astype(jnp.float32), refb, atol=0.05, rtol=0.05)

    print("KERNEL_OK")
</pallas_src>

<mosaic_0001>
module attributes {stable_mosaic.version = 11 : i64} {
  func.func @kernel(%arg0: i32, %arg1: i32, %arg2: memref<2x4x256xf32, #tpu.memory_space<vmem>>, %arg3: memref<8x4xf32, #tpu.memory_space<vmem>>, %arg4: memref<8x1xf32, #tpu.memory_space<vmem>>, %arg5: memref<2x8x256xf32, #tpu.memory_space<vmem>>) attributes {dimension_semantics = [#tpu.dimension_semantics<parallel>, #tpu.dimension_semantics<parallel>], iteration_bounds = array<i64: 1, 1>, scalar_prefetch = 0 : i64, scratch_operands = 0 : i64, tpu.core_type = #tpu.core_type<tc>, window_params = [{transform_indices = @transform_0, window_bounds = array<i64: 2, 4, 256>}, {pipeline_mode = #tpu.pipeline_mode<synchronous>, transform_indices = @transform_1, window_bounds = array<i64: 8, 4>}, {pipeline_mode = #tpu.pipeline_mode<synchronous>, transform_indices = @transform_2, window_bounds = array<i64: 8, 1>}, {transform_indices = @transform_3, window_bounds = array<i64: 2, 8, 256>}]} {
    %c0 = arith.constant 0 : index
    %c0_0 = arith.constant 0 : index
    %0 = vector.load %arg3[%c0, %c0_0] : memref<8x4xf32, #tpu.memory_space<vmem>>, vector<8x4xf32>
    %c0_1 = arith.constant 0 : index
    %c0_2 = arith.constant 0 : index
    %1 = vector.load %arg4[%c0_1, %c0_2] : memref<8x1xf32, #tpu.memory_space<vmem>>, vector<8x1xf32>
    %c0_i32 = arith.constant 0 : i32
    %2 = arith.index_cast %c0_i32 : i32 to index
    %c0_3 = arith.constant 0 : index
    %c0_4 = arith.constant 0 : index
    %3 = vector.load %arg2[%2, %c0_3, %c0_4] : memref<2x4x256xf32, #tpu.memory_space<vmem>>, vector<1x4x256xf32>
    %4 = vector.shape_cast %3 : vector<1x4x256xf32> to vector<4x256xf32>
    %cst = arith.constant dense<0.000000e+00> : vector<8x256xf32>
    %5 = tpu.matmul %0, %4, %cst {dimension_numbers = #tpu.dot_dimension_numbers<[1], [0], [0], [1], [0, 0, 1, 1], [], []>} : vector<8x4xf32>, vector<4x256xf32>, vector<8x256xf32> -> vector<8x256xf32>
    %6 = vector.broadcast %1 : vector<8x1xf32> to vector<8x256xf32>
    %7 = arith.addf %5, %6 : vector<8x256xf32>
    %8 = arith.index_cast %c0_i32 : i32 to index
    %c0_5 = arith.constant 0 : index
    %c0_6 = arith.constant 0 : index
    %9 = vector.load %arg5[%8, %c0_5, %c0_6] : memref<2x8x256xf32, #tpu.memory_space<vmem>>, vector<1x8x256xf32>
    %10 = vector.shape_cast %9 : vector<1x8x256xf32> to vector<8x256xf32>
    %11 = vector.shape_cast %7 : vector<8x256xf32> to vector<1x8x256xf32>
    tpu.vector_store %arg5[%8, %c0_5, %c0_6], %11 {strides = array<i32>} : memref<2x8x256xf32, #tpu.memory_space<vmem>>, vector<1x8x256xf32>,
    %c1_i32 = arith.constant 1 : i32
    %12 = arith.index_cast %c1_i32 : i32 to index
    %c0_7 = arith.constant 0 : index
    %c0_8 = arith.constant 0 : index
    %13 = vector.load %arg2[%12, %c0_7, %c0_8] : memref<2x4x256xf32, #tpu.memory_space<vmem>>, vector<1x4x256xf32>
    %14 = vector.shape_cast %13 : vector<1x4x256xf32> to vector<4x256xf32>
    %cst_9 = arith.constant dense<0.000000e+00> : vector<8x256xf32>
    %15 = tpu.matmul %0, %14, %cst_9 {dimension_numbers = #tpu.dot_dimension_numbers<[1], [0], [0], [1], [0, 0, 1, 1], [], []>} : vector<8x4xf32>, vector<4x256xf32>, vector<8x256xf32> -> vector<8x256xf32>
    %16 = vector.broadcast %1 : vector<8x1xf32> to vector<8x256xf32>
    %17 = arith.addf %15, %16 : vector<8x256xf32>
    %18 = arith.index_cast %c1_i32 : i32 to index
    %c0_10 = arith.constant 0 : index
    %c0_11 = arith.constant 0 : index
    %19 = vector.load %arg5[%18, %c0_10, %c0_11] : memref<2x8x256xf32, #tpu.memory_space<vmem>>, vector<1x8x256xf32>
    %20 = vector.shape_cast %19 : vector<1x8x256xf32> to vector<8x256xf32>
    %21 = vector.shape_cast %17 : vector<8x256xf32> to vector<1x8x256xf32>
    tpu.vector_store %arg5[%18, %c0_10, %c0_11], %21 {strides = array<i32>} : memref<2x8x256xf32, #tpu.memory_space<vmem>>, vector<1x8x256xf32>,
    %c2_i32 = arith.constant 2 : i32
    return
  }
  func.func @transform_0(%arg0: i32, %arg1: i32) -> (i32, i32, i32) {
    %c0_i32 = arith.constant 0 : i32
    %c0_i32_0 = arith.constant 0 : i32
    return %arg0, %c0_i32, %arg1 : i32, i32, i32
  }
  func.func @transform_1(%arg0: i32, %arg1: i32) -> (i32, i32) {
    %c0_i32 = arith.constant 0 : i32
    %c0_i32_0 = arith.constant 0 : i32
    %c0_i32_1 = arith.constant 0 : i32
    return %c0_i32, %c0_i32_0 : i32, i32
  }
  func.func @transform_2(%arg0: i32, %arg1: i32) -> (i32, i32) {
    %c0_i32 = arith.constant 0 : i32
    %c0_i32_0 = arith.constant 0 : i32
    %c0_i32_1 = arith.constant 0 : i32
    return %c0_i32, %c0_i32_0 : i32, i32
  }
  func.func @transform_3(%arg0: i32, %arg1: i32) -> (i32, i32, i32) {
    %c0_i32 = arith.constant 0 : i32
    %c0_i32_0 = arith.constant 0 : i32
    return %arg0, %c0_i32, %arg1 : i32, i32, i32
  }
}

</mosaic_0001>

<llo_original>
// kernel: tpu_custom_call.1
$region0: #{tpu_custom_call.1}
  #allocation0 [shape = 'u32[]', space=smem, size = 0x4, offset = 0x4, fixed_abs, tag = 'smem constant byte address 0x4 - core index']
  #allocation1 [shape = 'u32[144,128]{1,0:T(1,128)}', space=vmem, size = 0x12000, scoped, tag = 'internal scratch']
  %s0 = inlined_call_operand.vmem [shape: f32[2,4,256], index: 0, kind: input, shape index: {}]
  %s1 = inlined_call_operand.vmem [shape: f32[8,4], index: 1, kind: input, shape index: {}]
  %s2 = inlined_call_operand.vmem [shape: f32[8,1], index: 2, kind: input, shape index: {}]
  %s3 = inlined_call_operand.hbm [shape: f32[2,8,256], index: 3, kind: output, shape index: {}]
  %s4 = sld [smem:[#allocation0]]
  $region22: #{tpu_custom_call.1} parent=0
    _
  %s6 = ssub.s32 1, %s4
  %s7 = scalar_select 0, %s6, %s4
  $region1: #{tpu_custom_call.1} parent=0
    #allocation2 [shape = 'u8[16384]{0}', space=vmem, size = 0x4000, scoped, tag = 'output window, operand 0, single buffered']
    #allocation3 [shape = 's32[1]{0}', space=sflag, size = 0x4, scoped, tag = 'scoped memory for tpu_custom_call.1']
    %8 = vsyncpa [#allocation3], 0
    // Predicated region
    $region2: #{tpu_custom_call.1} parent=1 // pred_check
      _
    $region3: #{tpu_custom_call.1} parent=1 // pred_check_branch
      %10 = sbr.rel (0) target = $region5
    $region4: #{tpu_custom_call.1} parent=1 // pred_region
      _
    $region5: #{tpu_custom_call.1} parent=1 // pred_fallthru
      _
    // Predicated region
    $region6: #{tpu_custom_call.1} parent=1 // pred_check
      _
    $region7: #{tpu_custom_call.1} parent=1 // pred_check_branch
      %12 = sbr.rel (0) target = $region9
    $region8: #{tpu_custom_call.1} parent=1 // pred_region
      _
    $region9: #{tpu_custom_call.1} parent=1 // pred_fallthru
      _
    // Predicated region
    $region10: #{tpu_custom_call.1} parent=1 // pred_check
      _
    $region11: #{tpu_custom_call.1} parent=1 // pred_check_branch
      %14 = sbr.rel (0) target = $region13
    $region12: #{tpu_custom_call.1} parent=1 // pred_region
      _
    $region13: #{tpu_custom_call.1} parent=1 // pred_fallthru
      _
    %v15 = vld [vmem:[%s1] sm:$0xff]
    %v16 = vld [vmem:[%s2] sm:$0xff]
    %v17 = vld [vmem:[%s0] sm:$0xff]
    %19 = vset.pattern.permute.xlu0 0
    %20 = vperm.xlu0 %19, %v16
    %v21 = vpop.permute.xlu0 %20
    %v24 = vcombine.high %v17, %v17
    %vm25 = vcmask 31744
    %v27 = vsel %vm25, %v15, 0
    %vm29 = vcmask 1043456
    %v30 = vsel %vm29, %v17, 0
    %v32 = vsel %vm29, %v24, 0
    %34 = vmatprep.subr.mxu0 %v32
    %35 = vmatpush1.msra.mxu0 %v30
    %36 = vmatprep.subr.mxu0 0.0
    %37 = vmatpush1.msra.mxu0 0.0
    %38 = vmatprep.subr.mxu0 0.0
    %39 = vmatpush1.msra.mxu0 0.0
    %40 = vmatprep.subr.mxu0 0.0
    %41 = vmatpush1.msra.mxu0 0.0
    %42 = vmatprep.subr.mxu0 0.0
    %43 = vmatpush1.msra.mxu0 0.0
    %44 = vmatprep.subr.mxu0 0.0
    %45 = vmatpush1.msra.mxu0 0.0
    %46 = vmatprep.subr.mxu0 0.0
    %47 = vmatpush1.msra.mxu0 0.0
    %48 = vmatprep.subr.mxu0 0.0
    %49 = vmatpush1.msra.mxu0 0.0
    %50 = vmatprep.subr.mxu0 0.0
    %51 = vmatpush1.msra.mxu0 0.0
    %52 = vmatprep.subr.mxu0 0.0
    %53 = vmatpush1.msra.mxu0 0.0
    %54 = vmatprep.subr.mxu0 0.0
    %55 = vmatpush1.msra.mxu0 0.0
    %56 = vmatprep.subr.mxu0 0.0
    %57 = vmatpush1.msra.mxu0 0.0
    %58 = vmatprep.subr.mxu0 0.0
    %59 = vmatpush1.msra.mxu0 0.0
    %60 = vmatprep.subr.mxu0 0.0
    %61 = vmatpush1.msra.mxu0 0.0
    %62 = vmatprep.subr.mxu0 0.0
    %63 = vmatpush1.msra.mxu0 0.0
    %64 = vmatprep.subr.mxu0 0.0
    %65 = vmatpush1.msra.mxu0 0.0
    %66 = vmatprep.subr.mxu0 0.0
    %67 = vmatpush1.msra.mxu0 0.0
    %68 = vmatprep.subr.mxu0 0.0
    %69 = vmatpush1.msra.mxu0 0.0
    %70 = vmatprep.subr.mxu0 0.0
    %71 = vmatpush1.msra.mxu0 0.0
    %72 = vmatprep.subr.mxu0 0.0
    %73 = vmatpush1.msra.mxu0 0.0
    %74 = vmatprep.subr.mxu0 0.0
    %75 = vmatpush1.msra.mxu0 0.0
    %76 = vmatprep.subr.mxu0 0.0
    %77 = vmatpush1.msra.mxu0 0.0
    %78 = vmatprep.subr.mxu0 0.0
    %79 = vmatpush1.msra.mxu0 0.0
    %80 = vmatprep.subr.mxu0 0.0
    %81 = vmatpush1.msra.mxu0 0.0
    %82 = vmatprep.subr.mxu0 0.0
    %83 = vmatpush1.msra.mxu0 0.0
    %84 = vmatprep.subr.mxu0 0.0
    %85 = vmatpush1.msra.mxu0 0.0
    %86 = vmatprep.subr.mxu0 0.0
    %87 = vmatpush1.msra.mxu0 0.0
    %88 = vmatprep.subr.mxu0 0.0
    %89 = vmatpush1.msra.mxu0 0.0
    %90 = vmatprep.subr.mxu0 0.0
    %91 = vmatpush1.msra.mxu0 0.0
    %92 = vmatprep.subr.mxu0 0.0
    %93 = vmatpush1.msra.mxu0 0.0
    %94 = vmatprep.subr.mxu0 0.0
    %95 = vmatpush1.msra.mxu0 0.0
    %96 = vmatprep.subr.mxu0 0.0
    %97 = vmatpush1.msra.mxu0 0.0
    %98 = vmatprep.mubr.f32.mxu0 0.0
    %99 = vmatmul.mubr.f32.gmra.mrb[0].mxu0 %v27
    %v100 = vpop.f32.mrb[0].mxu0
    %v101 = vadd.f32 %v21, %v100
    %v102 = vpop.f32.mrb[0].mxu0
    %v103 = vadd.f32 %v21, %v102
    %104 = vdwg.mxu0
    %105 = vst [vmem:[#allocation2] sm:$0xff] %v101
    %106 = vst [vmem:[#allocation2 + $0x8] sm:$0xff] %v103
    %s107 = scalar_lea.vmem %s0, 8
    %v108 = vld [vmem:[%s107] sm:$0xff]
    %v110 = vcombine.high %v108, %v108
    %v111 = vsel %vm29, %v108, 0
    %v113 = vsel %vm29, %v110, 0
    %115 = vmatprep.subr.mxu0 %v113
    %116 = vmatpush1.msra.mxu0 %v111
    %117 = vmatprep.subr.mxu0 0.0
    %118 = vmatpush1.msra.mxu0 0.0
    %119 = vmatprep.subr.mxu0 0.0
    %120 = vmatpush1.msra.mxu0 0.0
    %121 = vmatprep.subr.mxu0 0.0
    %122 = vmatpush1.msra.mxu0 0.0
    %123 = vmatprep.subr.mxu0 0.0
    %124 = vmatpush1.msra.mxu0 0.0
    %125 = vmatprep.subr.mxu0 0.0
    %126 = vmatpush1.msra.mxu0 0.0
    %127 = vmatprep.subr.mxu0 0.0
    %128 = vmatpush1.msra.mxu0 0.0
    %129 = vmatprep.subr.mxu0 0.0
    %130 = vmatpush1.msra.mxu0 0.0
    %131 = vmatprep.subr.mxu0 0.0
    %132 = vmatpush1.msra.mxu0 0.0
    %133 = vmatprep.subr.mxu0 0.0
    %134 = vmatpush1.msra.mxu0 0.0
    %135 = vmatprep.subr.mxu0 0.0
    %136 = vmatpush1.msra.mxu0 0.0
    %137 = vmatprep.subr.mxu0 0.0
    %138 = vmatpush1.msra.mxu0 0.0
    %139 = vmatprep.subr.mxu0 0.0
    %140 = vmatpush1.msra.mxu0 0.0
    %141 = vmatprep.subr.mxu0 0.0
    %142 = vmatpush1.msra.mxu0 0.0
    %143 = vmatprep.subr.mxu0 0.0
    %144 = vmatpush1.msra.mxu0 0.0
    %145 = vmatprep.subr.mxu0 0.0
    %146 = vmatpush1.msra.mxu0 0.0
    %147 = vmatprep.subr.mxu0 0.0
    %148 = vmatpush1.msra.mxu0 0.0
    %149 = vmatprep.subr.mxu0 0.0
    %150 = vmatpush1.msra.mxu0 0.0
    %151 = vmatprep.subr.mxu0 0.0
    %152 = vmatpush1.msra.mxu0 0.0
    %153 = vmatprep.subr.mxu0 0.0
    %154 = vmatpush1.msra.mxu0 0.0
    %155 = vmatprep.subr.mxu0 0.0
    %156 = vmatpush1.msra.mxu0 0.0
    %157 = vmatprep.subr.mxu0 0.0
    %158 = vmatpush1.msra.mxu0 0.0
    %159 = vmatprep.subr.mxu0 0.0
    %160 = vmatpush1.msra.mxu0 0.0
    %161 = vmatprep.subr.mxu0 0.0
    %162 = vmatpush1.msra.mxu0 0.0
    %163 = vmatprep.subr.mxu0 0.0
    %164 = vmatpush1.msra.mxu0 0.0
    %165 = vmatprep.subr.mxu0 0.0
    %166 = vmatpush1.msra.mxu0 0.0
    %167 = vmatprep.subr.mxu0 0.0
    %168 = vmatpush1.msra.mxu0 0.0
    %169 = vmatprep.subr.mxu0 0.0
    %170 = vmatpush1.msra.mxu0 0.0
    %171 = vmatprep.subr.mxu0 0.0
    %172 = vmatpush1.msra.mxu0 0.0
    %173 = vmatprep.subr.mxu0 0.0
    %174 = vmatpush1.msra.mxu0 0.0
    %175 = vmatprep.subr.mxu0 0.0
    %176 = vmatpush1.msra.mxu0 0.0
    %177 = vmatprep.subr.mxu0 0.0
    %178 = vmatpush1.msra.mxu0 0.0
    %179 = vmatprep.mubr.f32.mxu0 0.0
    %180 = vmatmul.mubr.f32.gmra.mrb[0].mxu0 %v27
    %v181 = vpop.f32.mrb[0].mxu0
    %v182 = vadd.f32 %v21, %v181
    %v183 = vpop.f32.mrb[0].mxu0
    %v184 = vadd.f32 %v21, %v183
    %185 = vdwg.mxu0
    %s186 = scalar_lea.vmem [#allocation2], 16
    %187 = vst [vmem:[%s186] sm:$0xff] %v182
    %188 = vst [vmem:[%s186 + $0x8] sm:$0xff] %v184
    // Predicated region
    $region14: #{tpu_custom_call.1} parent=1 // pred_check
      _
    $region15: #{tpu_custom_call.1} parent=1 // pred_check_branch
      %190 = sbr.rel (0) target = $region17
    $region16: #{tpu_custom_call.1} parent=1 // pred_region
      %s192 = ssub.s32 512, 512
      %193 = vsyncadd [#allocation3], %s192
      %s194 = sshll.u32 [#allocation2], 4
      %s195 = int_to_ptr.vmem [resolvable:$true] %s194
      %200 = dma.vmem_to_hbm [thread:$0]  %s195, 512, %s3, [#allocation3], 256, 256, 16
    $region17: #{tpu_custom_call.1} parent=1 // pred_fallthru
      _
    // Predicated region
    $region18: #{tpu_custom_call.1} parent=1 // pred_check
      _
    $region19: #{tpu_custom_call.1} parent=1 // pred_check_branch
      %202 = sbr.rel (0) target = $region21
    $region20: #{tpu_custom_call.1} parent=1 // pred_region
      %203 = dma.done [#allocation3], 512
    $region21: #{tpu_custom_call.1} parent=1 // pred_fallthru
      _
    %204 = vsyncpa [#allocation3], 1

</llo_original>
